<compile_context>
chip_gen: v6e
topology: v6e:2x2x1
jax: 0.10.0
libtpu: 0.0.40
codegen_flags: <defaults>
</compile_context>

<pallas_src>
import functools

import jax
import jax.numpy as jnp
from jax.experimental import pallas as pl
from jax.experimental.pallas import tpu as pltpu


# ----------------------------------------------------------------------------
# small helpers
# ----------------------------------------------------------------------------
def _round_up(x, m):
    return (x + m - 1) // m * m


def _pad_to(x, shape):
    pads = [(0, s - d) for d, s in zip(x.shape, shape)]
    return jnp.pad(x, pads)


def _default_vmem_budget():
    """~75% of physical VMEM; conservative 48 MiB fallback (v7x-safe)."""
    cap = 64 << 20
    try:
        info = pltpu.get_tpu_info()
        cap = int(getattr(info, "vmem_capacity_bytes", cap)) or cap
    except Exception:
        pass
    return (cap * 3) // 4


def _vmem_estimate(bs_p, tk, tn, multi, itemsize, grid_k):
    """Double-buffered block footprint (bias sublane-padded to 8)."""
    est = (2 * 3 * bs_p * tk * itemsize            # stacked activations
           + 2 * 3 * tk * multi * tn * itemsize    # packed weight tile
           + 2 * 3 * 8 * multi * tn * 4            # packed bias tile (f32)
           + 2 * bs_p * tn * 4)                    # output tile (f32)
    if grid_k > 1:
        est += 3 * bs_p * multi * tn * 4           # f32 scratch accumulator
    return est


def _choose_tk(dim_p, bs_p, multi, tn, itemsize, budget):
    """Largest K chunk (multiple of 128 dividing dim_p) whose blocks fit VMEM."""
    for tk in range(dim_p, 127, -128):
        if dim_p % tk:
            continue
        if _vmem_estimate(bs_p, tk, tn, multi, itemsize, dim_p // tk) <= budget:
            return tk
    return 128


# ----------------------------------------------------------------------------
# kernels
# ----------------------------------------------------------------------------
def _mutan_kernel_fused(x_ref, w_ref, b_ref, o_ref, *, multi, tn):
    """Single-K-step kernel (whole reduction dim resident).

    x_ref: (3, bs_p, dim_p)            bf16
    w_ref: (3, dim_p, multi*tn)        bf16   (columns ordered m-major within tile)
    b_ref: (3, 1, multi*tn)            f32
    o_ref: (bs_p, tn)                  f32
    """
    bs = x_ref.shape[1]
    prod = None
    for mod in range(3):
        h = jnp.dot(x_ref[mod], w_ref[mod], preferred_element_type=jnp.float32)
        h = jnp.maximum(h + b_ref[mod], 0.0)
        prod = h if prod is None else prod * h
    acc = jnp.zeros((bs, tn), jnp.float32)
    for m in range(multi):
        acc = acc + prod[:, m * tn:(m + 1) * tn]
    o_ref[...] = jnp.maximum(acc, 0.0).astype(o_ref.dtype)


def _mutan_kernel_ktiled(x_ref, w_ref, b_ref, o_ref, acc_ref, *, multi, tn):
    """K-tiled kernel: f32 pre-activation accumulator in VMEM scratch.

    x_ref:   (3, bs_p, tk)             bf16
    w_ref:   (3, tk, multi*tn)         bf16
    b_ref:   (3, 1, multi*tn)          f32
    o_ref:   (bs_p, tn)                f32
    acc_ref: (3, bs_p, multi*tn)       f32 scratch
    """
    k = pl.program_id(1)

    @pl.when(k == 0)
    def _():
        acc_ref[...] = jnp.zeros_like(acc_ref)

    for mod in range(3):
        acc_ref[mod] = acc_ref[mod] + jnp.dot(
            x_ref[mod], w_ref[mod], preferred_element_type=jnp.float32)

    @pl.when(k == pl.num_programs(1) - 1)
    def _():
        prod = None
        for mod in range(3):
            h = jnp.maximum(acc_ref[mod] + b_ref[mod], 0.0)
            prod = h if prod is None else prod * h
        acc = jnp.zeros((o_ref.shape[0], tn), jnp.float32)
        for m in range(multi):
            acc = acc + prod[:, m * tn:(m + 1) * tn]
        o_ref[...] = jnp.maximum(acc, 0.0).astype(o_ref.dtype)


# ----------------------------------------------------------------------------
# one-time parameter packing (hoisted out of the forward path)
# ----------------------------------------------------------------------------
def pack_mutan_params(w1, w2, w3, b1, b2, b3, *, compute_dtype=jnp.bfloat16):
    """Pack PyTorch-convention weights ONCE into the kernel's streaming layout.

    w*: (multi, dim, dim) nn.Linear weights (out, in);  b*: (multi, dim).
    Returns (w_packed, b_packed, meta):
      w_packed: (3, dim_p, grid_n*multi*tn) compute_dtype
      b_packed: (3, 1,     grid_n*multi*tn) float32
    Column order within an output tile j: [m=0 tn cols | m=1 tn cols | ...].
    """
    multi, out_dim, in_dim = w1.shape
    assert out_dim == in_dim, "MutanLayer uses square Linear(dim, dim)"
    dim = out_dim
    assert w2.shape == w1.shape == w3.shape
    assert b1.shape == (multi, dim) and b2.shape == b1.shape == b3.shape

    dim_p = _round_up(dim, 128)
    tn = next(t for t in (512, 256, 128) if dim_p % t == 0)
    grid_n = dim_p // tn

    w = jnp.stack([w1, w2, w3], axis=0)                 # (3, multi, out, in)
    w = jnp.transpose(w, (0, 3, 1, 2))                  # (3, in, multi, out)
    w = _pad_to(w, (3, dim_p, multi, dim_p))
    w = w.reshape(3, dim_p, multi, grid_n, tn)
    w = jnp.transpose(w, (0, 1, 3, 2, 4))               # (3, in, grid_n, multi, tn)
    w = w.reshape(3, dim_p, grid_n * multi * tn).astype(compute_dtype)

    b = jnp.stack([b1, b2, b3], axis=0)                 # (3, multi, out)
    b = _pad_to(b, (3, multi, dim_p))
    b = b.reshape(3, multi, grid_n, tn)
    b = jnp.transpose(b, (0, 2, 1, 3))                  # (3, grid_n, multi, tn)
    b = b.reshape(3, 1, grid_n * multi * tn).astype(jnp.float32)

    meta = dict(dim=dim, dim_p=dim_p, multi=multi, tn=tn,
                compute_dtype=compute_dtype)
    return w, b, meta


# ----------------------------------------------------------------------------
# forward (jit-able; all tiling decisions are static Python)
# ----------------------------------------------------------------------------
def _mutan_forward(x1, x2, x3, w_packed, b_packed, *, dim, dim_p, multi, tn,
                   tk, compute_dtype, vmem_budget):
    bs = x1.shape[0]
    bs_p = _round_up(bs, 8)
    grid_n = dim_p // tn
    itemsize = jnp.dtype(compute_dtype).itemsize

    if tk is None:
        tk = _choose_tk(dim_p, bs_p, multi, tn, itemsize, vmem_budget)
    assert dim_p % tk == 0 and tk % 128 == 0, (dim_p, tk)
    grid_k = dim_p // tk

    # Per-call activation packing only (weights were packed once at init).
    x = jnp.stack([x1, x2, x3], axis=0)                 # (3, bs, dim)
    x = _pad_to(x, (3, bs_p, dim_p)).astype(compute_dtype)

    if grid_k == 1:
        kernel = functools.partial(_mutan_kernel_fused, multi=multi, tn=tn)
        scratch = []
    else:
        kernel = functools.partial(_mutan_kernel_ktiled, multi=multi, tn=tn)
        scratch = [pltpu.VMEM((3, bs_p, multi * tn), jnp.float32)]

    x_spec = pl.BlockSpec((3, bs_p, tk), lambda j, k: (0, 0, k))
    w_spec = pl.BlockSpec((3, tk, multi * tn), lambda j, k: (0, k, j))
    b_spec = pl.BlockSpec((3, 1, multi * tn), lambda j, k: (0, 0, j))
    o_spec = pl.BlockSpec((bs_p, tn), lambda j, k: (0, j))

    out = pl.pallas_call(
        kernel,
        out_shape=jax.ShapeDtypeStruct((bs_p, dim_p), jnp.float32),
        grid_spec=pltpu.PrefetchScalarGridSpec(
            num_scalar_prefetch=0,
            grid=(grid_n, grid_k),               # output tiles x K reduction
            in_specs=[x_spec, w_spec, b_spec],
            out_specs=o_spec,
            scratch_shapes=scratch),
        compiler_params=pltpu.CompilerParams(
            dimension_semantics=("parallel", "arbitrary"),
            vmem_limit_bytes=int(vmem_budget)),
    )(x, w_packed, b_packed)

    return out[:bs, :dim]


def make_mutan_layer(w1, w2, w3, b1, b2, b3, *, compute_dtype=jnp.bfloat16,
                     tk=None, vmem_budget=None):
    """Pack parameters once, return a jitted apply(x1, x2, x3) -> (bs, dim) f32."""
    w_packed, b_packed, meta = pack_mutan_params(
        w1, w2, w3, b1, b2, b3, compute_dtype=compute_dtype)
    budget = int(vmem_budget) if vmem_budget is not None else _default_vmem_budget()

    fwd = jax.jit(functools.partial(
        _mutan_forward,
        dim=meta["dim"], dim_p=meta["dim_p"], multi=meta["multi"],
        tn=meta["tn"], tk=tk, compute_dtype=compute_dtype, vmem_budget=budget))

    def apply(x1, x2, x3):
        return fwd(x1, x2, x3, w_packed, b_packed)

    return apply


# ----------------------------------------------------------------------------
# pure-JAX reference (same bf16-cast operands the kernel streams)
# ----------------------------------------------------------------------------
def reference(x1, x2, x3, w1, w2, w3, b1, b2, b3, compute_dtype=jnp.bfloat16):
    def branch(x, w, b, m):
        xf = x.astype(compute_dtype).astype(jnp.float32)
        wf = w[m].astype(compute_dtype).astype(jnp.float32)
        return jax.nn.relu(xf @ wf.T + b[m].astype(jnp.float32))

    acc = 0.0
    for m in range(w1.shape[0]):
        acc = acc + (branch(x1, w1, b1, m)
                     * branch(x2, w2, b2, m)
                     * branch(x3, w3, b3, m))
    return jax.nn.relu(acc)


# ----------------------------------------------------------------------------
# self-test
# ----------------------------------------------------------------------------
if __name__ == "__main__":
    def make_case(key, bs, dim, multi):
        ks = jax.random.split(key, 9)
        scale = 1.0 / jnp.sqrt(dim)
        xs = [jax.random.normal(ks[i], (bs, dim), dtype=jnp.float32)
              for i in range(3)]
        # PyTorch nn.Linear layout: (out, in) weights, (dim,) bias per multi-slot.
        ws = [jax.random.uniform(ks[3 + i], (multi, dim, dim),
                                 minval=-1.0, maxval=1.0) * scale
              for i in range(3)]
        bs_ = [jax.random.uniform(ks[6 + i], (multi, dim),
                                  minval=-1.0, maxval=1.0) * scale
               for i in range(3)]
        return xs, ws, bs_

    key = jax.random.PRNGKey(0)
    k1, k2, k3 = jax.random.split(key, 3)

    # (bs, dim, multi, forced_tk, key). First case = the model's actual config
    # (MutanLayer(dim=128, multi=2), batch 8). The others exercise the N-tiled
    # grid, the K-tiled accumulator path, and the tn=512 fused path.
    cases = [
        (8, 128, 2, None, k1),
        (8, 640, 3, 128, k2),
        (8, 1024, 2, None, k3),
    ]

    for bs, dim, multi, tk, kk in cases:
        (x1, x2, x3), (w1, w2, w3), (b1, b2, b3) = make_case(kk, bs, dim, multi)

        layer = make_mutan_layer(w1, w2, w3, b1, b2, b3, tk=tk)
        out = layer(x1, x2, x3)
        jax.block_until_ready(out)

        ref = reference(x1, x2, x3, w1, w2, w3, b1, b2, b3)
        assert out.shape == (bs, dim), (out.shape, (bs, dim))
        err = jnp.max(jnp.abs(out - ref))
        assert jnp.allclose(out, ref, atol=5e-3, rtol=5e-3), \
            f"case bs={bs} dim={dim} multi={multi}: max abs err {err}"

    print("KERNEL_OK")
</pallas_src>

<mosaic_0001>
module attributes {stable_mosaic.version = 11 : i64} {
  func.func @_mutan_kernel_fused(%arg0: i32, %arg1: i32, %arg2: memref<3x8x128xbf16, #tpu.memory_space<vmem>>, %arg3: memref<3x128x256xbf16, #tpu.memory_space<vmem>>, %arg4: memref<3x1x256xf32, #tpu.memory_space<vmem>>, %arg5: memref<8x128xf32, #tpu.memory_space<vmem>>) attributes {dimension_semantics = [#tpu.dimension_semantics<parallel>, #tpu.dimension_semantics<arbitrary>], iteration_bounds = array<i64: 1, 1>, scalar_prefetch = 0 : i64, scratch_operands = 0 : i64, tpu.core_type = #tpu.core_type<tc>, window_params = [{transform_indices = @transform_0, window_bounds = array<i64: 3, 8, 128>}, {transform_indices = @transform_1, window_bounds = array<i64: 3, 128, 256>}, {transform_indices = @transform_2, window_bounds = array<i64: 3, 1, 256>}, {transform_indices = @transform_3, window_bounds = array<i64: 8, 128>}]} {
    %c0 = arith.constant 0 : index
    %c0_0 = arith.constant 0 : index
    %c0_1 = arith.constant 0 : index
    %0 = vector.load %arg2[%c0, %c0_0, %c0_1] : memref<3x8x128xbf16, #tpu.memory_space<vmem>>, vector<1x8x128xbf16>
    %1 = vector.shape_cast %0 : vector<1x8x128xbf16> to vector<8x128xbf16>
    %c0_2 = arith.constant 0 : index
    %c0_3 = arith.constant 0 : index
    %c0_4 = arith.constant 0 : index
    %2 = vector.load %arg3[%c0_2, %c0_3, %c0_4] : memref<3x128x256xbf16, #tpu.memory_space<vmem>>, vector<1x128x256xbf16>
    %3 = vector.shape_cast %2 : vector<1x128x256xbf16> to vector<128x256xbf16>
    %cst = arith.constant dense<0.000000e+00> : vector<8x256xf32>
    %4 = tpu.matmul %1, %3, %cst {dimension_numbers = #tpu.dot_dimension_numbers<[1], [0], [0], [1], [0, 0, 1, 1], [], []>} : vector<8x128xbf16>, vector<128x256xbf16>, vector<8x256xf32> -> vector<8x256xf32>
    %c0_5 = arith.constant 0 : index
    %c0_6 = arith.constant 0 : index
    %c0_7 = arith.constant 0 : index
    %5 = vector.load %arg4[%c0_5, %c0_6, %c0_7] : memref<3x1x256xf32, #tpu.memory_space<vmem>>, vector<1x1x256xf32>
    %6 = vector.shape_cast %5 : vector<1x1x256xf32> to vector<1x256xf32>
    %7 = vector.broadcast %6 : vector<1x256xf32> to vector<8x256xf32>
    %8 = arith.addf %4, %7 : vector<8x256xf32>
    %cst_8 = arith.constant 0.000000e+00 : f32
    %9 = vector.broadcast %cst_8 : f32 to vector<8x256xf32>
    %10 = arith.maximumf %8, %9 : vector<8x256xf32>
    %c1 = arith.constant 1 : index
    %c0_9 = arith.constant 0 : index
    %c0_10 = arith.constant 0 : index
    %11 = vector.load %arg2[%c1, %c0_9, %c0_10] : memref<3x8x128xbf16, #tpu.memory_space<vmem>>, vector<1x8x128xbf16>
    %12 = vector.shape_cast %11 : vector<1x8x128xbf16> to vector<8x128xbf16>
    %c1_11 = arith.constant 1 : index
    %c0_12 = arith.constant 0 : index
    %c0_13 = arith.constant 0 : index
    %13 = vector.load %arg3[%c1_11, %c0_12, %c0_13] : memref<3x128x256xbf16, #tpu.memory_space<vmem>>, vector<1x128x256xbf16>
    %14 = vector.shape_cast %13 : vector<1x128x256xbf16> to vector<128x256xbf16>
    %cst_14 = arith.constant dense<0.000000e+00> : vector<8x256xf32>
    %15 = tpu.matmul %12, %14, %cst_14 {dimension_numbers = #tpu.dot_dimension_numbers<[1], [0], [0], [1], [0, 0, 1, 1], [], []>} : vector<8x128xbf16>, vector<128x256xbf16>, vector<8x256xf32> -> vector<8x256xf32>
    %c1_15 = arith.constant 1 : index
    %c0_16 = arith.constant 0 : index
    %c0_17 = arith.constant 0 : index
    %16 = vector.load %arg4[%c1_15, %c0_16, %c0_17] : memref<3x1x256xf32, #tpu.memory_space<vmem>>, vector<1x1x256xf32>
    %17 = vector.shape_cast %16 : vector<1x1x256xf32> to vector<1x256xf32>
    %18 = vector.broadcast %17 : vector<1x256xf32> to vector<8x256xf32>
    %19 = arith.addf %15, %18 : vector<8x256xf32>
    %cst_18 = arith.constant 0.000000e+00 : f32
    %20 = vector.broadcast %cst_18 : f32 to vector<8x256xf32>
    %21 = arith.maximumf %19, %20 : vector<8x256xf32>
    %22 = arith.mulf %10, %21 : vector<8x256xf32>
    %c2 = arith.constant 2 : index
    %c0_19 = arith.constant 0 : index
    %c0_20 = arith.constant 0 : index
    %23 = vector.load %arg2[%c2, %c0_19, %c0_20] : memref<3x8x128xbf16, #tpu.memory_space<vmem>>, vector<1x8x128xbf16>
    %24 = vector.shape_cast %23 : vector<1x8x128xbf16> to vector<8x128xbf16>
    %c2_21 = arith.constant 2 : index
    %c0_22 = arith.constant 0 : index
    %c0_23 = arith.constant 0 : index
    %25 = vector.load %arg3[%c2_21, %c0_22, %c0_23] : memref<3x128x256xbf16, #tpu.memory_space<vmem>>, vector<1x128x256xbf16>
    %26 = vector.shape_cast %25 : vector<1x128x256xbf16> to vector<128x256xbf16>
    %cst_24 = arith.constant dense<0.000000e+00> : vector<8x256xf32>
    %27 = tpu.matmul %24, %26, %cst_24 {dimension_numbers = #tpu.dot_dimension_numbers<[1], [0], [0], [1], [0, 0, 1, 1], [], []>} : vector<8x128xbf16>, vector<128x256xbf16>, vector<8x256xf32> -> vector<8x256xf32>
    %c2_25 = arith.constant 2 : index
    %c0_26 = arith.constant 0 : index
    %c0_27 = arith.constant 0 : index
    %28 = vector.load %arg4[%c2_25, %c0_26, %c0_27] : memref<3x1x256xf32, #tpu.memory_space<vmem>>, vector<1x1x256xf32>
    %29 = vector.shape_cast %28 : vector<1x1x256xf32> to vector<1x256xf32>
    %30 = vector.broadcast %29 : vector<1x256xf32> to vector<8x256xf32>
    %31 = arith.addf %27, %30 : vector<8x256xf32>
    %cst_28 = arith.constant 0.000000e+00 : f32
    %32 = vector.broadcast %cst_28 : f32 to vector<8x256xf32>
    %33 = arith.maximumf %31, %32 : vector<8x256xf32>
    %34 = arith.mulf %22, %33 : vector<8x256xf32>
    %cst_29 = arith.constant 0.000000e+00 : f32
    %35 = vector.broadcast %cst_29 : f32 to vector<8x128xf32>
    %36 = vector.extract_strided_slice %34 {offsets = [0, 0], sizes = [8, 128], strides = [1, 1]} : vector<8x256xf32> to vector<8x128xf32>
    %37 = arith.addf %35, %36 : vector<8x128xf32>
    %38 = vector.extract_strided_slice %34 {offsets = [0, 128], sizes = [8, 128], strides = [1, 1]} : vector<8x256xf32> to vector<8x128xf32>
    %39 = arith.addf %37, %38 : vector<8x128xf32>
    %cst_30 = arith.constant 0.000000e+00 : f32
    %40 = vector.broadcast %cst_30 : f32 to vector<8x128xf32>
    %41 = arith.maximumf %39, %40 : vector<8x128xf32>
    %c0_31 = arith.constant 0 : index
    %c0_32 = arith.constant 0 : index
    %42 = vector.load %arg5[%c0_31, %c0_32] : memref<8x128xf32, #tpu.memory_space<vmem>>, vector<8x128xf32>
    tpu.vector_store %arg5[%c0_31, %c0_32], %41 {strides = array<i32>} : memref<8x128xf32, #tpu.memory_space<vmem>>, vector<8x128xf32>,
    return
  }
  func.func @transform_0(%arg0: i32, %arg1: i32) -> (i32, i32, i32) {
    %c0_i32 = arith.constant 0 : i32
    %c0_i32_0 = arith.constant 0 : i32
    %c0_i32_1 = arith.constant 0 : i32
    return %c0_i32, %c0_i32_0, %arg1 : i32, i32, i32
  }
  func.func @transform_1(%arg0: i32, %arg1: i32) -> (i32, i32, i32) {
    %c0_i32 = arith.constant 0 : i32
    %c0_i32_0 = arith.constant 0 : i32
    return %c0_i32, %arg1, %arg0 : i32, i32, i32
  }
  func.func @transform_2(%arg0: i32, %arg1: i32) -> (i32, i32, i32) {
    %c0_i32 = arith.constant 0 : i32
    %c0_i32_0 = arith.constant 0 : i32
    %c0_i32_1 = arith.constant 0 : i32
    return %c0_i32, %c0_i32_0, %arg0 : i32, i32, i32
  }
  func.func @transform_3(%arg0: i32, %arg1: i32) -> (i32, i32) {
    %c0_i32 = arith.constant 0 : i32
    %c0_i32_0 = arith.constant 0 : i32
    return %c0_i32, %arg0 : i32, i32
  }
}

</mosaic_0001>

<llo_original>
// kernel: _mutan_forward.1
$region0: #{_mutan_forward.1}
  #allocation0 [shape = 'u32[]', space=smem, size = 0x4, offset = 0x4, fixed_abs, tag = 'smem constant byte address 0x4 - core index']
  #allocation1 [shape = 'u32[144,128]{1,0:T(1,128)}', space=vmem, size = 0x12000, scoped, tag = 'internal scratch']
  %s0 = inlined_call_operand.vmem [shape: bf16[3,8,128], index: 0, kind: input, shape index: {}]
  %s1 = inlined_call_operand.hbm [shape: bf16[3,128,256], index: 1, kind: input, shape index: {}]
  %s2 = inlined_call_operand.vmem [shape: f32[3,1,256], index: 2, kind: input, shape index: {}]
  %s3 = inlined_call_operand.hbm [shape: f32[8,128], index: 3, kind: output, shape index: {}]
  %s4 = sld [smem:[#allocation0]]
  $region26: #{_mutan_forward.1} parent=0
    _
  %s6 = ssub.s32 1, %s4
  %s7 = scalar_select 0, %s6, %s4
  $region1: #{_mutan_forward.1} parent=0
    #allocation2 [shape = 'u8[196608]{0}', space=vmem, size = 0x30000, scoped, tag = 'input window, operand 1, single buffered']
    #allocation3 [shape = 's32[1]{0}', space=sflag, size = 0x4, scoped, tag = 'scoped memory for _mutan_forward.1']
    #allocation4 [shape = 's32[1]{0}', space=sflag, size = 0x4, scoped, tag = 'scoped memory for _mutan_forward.1']
    #allocation5 [shape = 'u8[4096]{0}', space=vmem, size = 0x1000, scoped, tag = 'output window, operand 0, single buffered']
    %8 = vsyncpa [#allocation3], 0
    %9 = vsyncpa [#allocation4], 0
    // Predicated region
    $region2: #{_mutan_forward.1} parent=1 // pred_check
      _
    $region3: #{_mutan_forward.1} parent=1 // pred_check_branch
      %11 = sbr.rel (0) target = $region5
    $region4: #{_mutan_forward.1} parent=1 // pred_region
      _
    $region5: #{_mutan_forward.1} parent=1 // pred_fallthru
      _
    // Predicated region
    $region6: #{_mutan_forward.1} parent=1 // pred_check
      _
    $region7: #{_mutan_forward.1} parent=1 // pred_check_branch
      %13 = sbr.rel (0) target = $region9
    $region8: #{_mutan_forward.1} parent=1 // pred_region
      %s15 = ssub.s32 6144, 6144
      %16 = vsyncadd [#allocation3], %s15
      %s17 = sshll.u32 [#allocation2], 4
      %s18 = int_to_ptr.vmem [resolvable:$true] %s17
      %23 = dma.hbm_to_vmem [thread:$0]  %s1, 6144, %s18, [#allocation3], 128, 128, 8
    $region9: #{_mutan_forward.1} parent=1 // pred_fallthru
      _
    // Predicated region
    $region10: #{_mutan_forward.1} parent=1 // pred_check
      _
    $region11: #{_mutan_forward.1} parent=1 // pred_check_branch
      %25 = sbr.rel (0) target = $region13
    $region12: #{_mutan_forward.1} parent=1 // pred_region
      _
    $region13: #{_mutan_forward.1} parent=1 // pred_fallthru
      _
    // Predicated region
    $region14: #{_mutan_forward.1} parent=1 // pred_check
      _
    $region15: #{_mutan_forward.1} parent=1 // pred_check_branch
      %27 = sbr.rel (0) target = $region17
    $region16: #{_mutan_forward.1} parent=1 // pred_region
      %28 = dma.done [#allocation3], 6144
    $region17: #{_mutan_forward.1} parent=1 // pred_fallthru
      _
    %v30 = vld [vmem:[%s0] sm:$0xf]
    %v31 = vld [vmem:[#allocation2] sm:$0xff]
    %v32 = vld [vmem:[#allocation2 + $0x8] sm:$0xff]
    %v33 = vld [vmem:[#allocation2 + $0x10] sm:$0xff]
    %v34 = vld [vmem:[#allocation2 + $0x18] sm:$0xff]
    %v35 = vld [vmem:[#allocation2 + $0x20] sm:$0xff]
    %v36 = vld [vmem:[#allocation2 + $0x28] sm:$0xff]
    %v37 = vld [vmem:[#allocation2 + $0x30] sm:$0xff]
    %v38 = vld [vmem:[#allocation2 + $0x38] sm:$0xff]
    %v39 = vld [vmem:[#allocation2 + $0x40] sm:$0xff]
    %v40 = vld [vmem:[#allocation2 + $0x48] sm:$0xff]
    %v41 = vld [vmem:[#allocation2 + $0x50] sm:$0xff]
    %v42 = vld [vmem:[#allocation2 + $0x58] sm:$0xff]
    %v43 = vld [vmem:[#allocation2 + $0x60] sm:$0xff]
    %v44 = vld [vmem:[#allocation2 + $0x68] sm:$0xff]
    %v45 = vld [vmem:[#allocation2 + $0x70] sm:$0xff]
    %v46 = vld [vmem:[#allocation2 + $0x78] sm:$0xff]
    %v47 = vld [vmem:[%s2] sm:$0x3]
    %v49 = vlaneseq
    %v50 = vshrl.u32 %v49, 7
    %v51 = vsub.s32 0, %v50
    %v52 = vrot.slane %v47, %v51
    %v53 = vlaneseq
    %v54 = vshrl.u32 %v53, 7
    %v55 = vsub.s32 1, %v54
    %v56 = vrot.slane %v47, %v55
    %v75 = vunpack.c.l.b16 %v31
    %v76 = vunpack.c.h.b16 %v31
    %v77 = vunpack.c.l.b16 %v32
    %v78 = vunpack.c.h.b16 %v32
    %v79 = vunpack.c.l.b16 %v33
    %v80 = vunpack.c.h.b16 %v33
    %v81 = vunpack.c.l.b16 %v34
    %v82 = vunpack.c.h.b16 %v34
    %v83 = vunpack.c.l.b16 %v35
    %v84 = vunpack.c.h.b16 %v35
    %v85 = vunpack.c.l.b16 %v36
    %v86 = vunpack.c.h.b16 %v36
    %v87 = vunpack.c.l.b16 %v37
    %v88 = vunpack.c.h.b16 %v37
    %v89 = vunpack.c.l.b16 %v38
    %v90 = vunpack.c.h.b16 %v38
    %v91 = vunpack.c.l.b16 %v39
    %v92 = vunpack.c.h.b16 %v39
    %v93 = vunpack.c.l.b16 %v40
    %v94 = vunpack.c.h.b16 %v40
    %v95 = vunpack.c.l.b16 %v41
    %v96 = vunpack.c.h.b16 %v41
    %v97 = vunpack.c.l.b16 %v42
    %v98 = vunpack.c.h.b16 %v42
    %v99 = vunpack.c.l.b16 %v43
    %v100 = vunpack.c.h.b16 %v43
    %v101 = vunpack.c.l.b16 %v44
    %v102 = vunpack.c.h.b16 %v44
    %v103 = vunpack.c.l.b16 %v45
    %v104 = vunpack.c.h.b16 %v45
    %v105 = vunpack.c.l.b16 %v46
    %v106 = vunpack.c.h.b16 %v46
    %v107 = vpack.c.b16 %v77, %v75
    %v108 = vpack.c.b16 %v78, %v76
    %v109 = vpack.c.b16 %v81, %v79
    %v110 = vpack.c.b16 %v82, %v80
    %v111 = vpack.c.b16 %v85, %v83
    %v112 = vpack.c.b16 %v86, %v84
    %v113 = vpack.c.b16 %v89, %v87
    %v114 = vpack.c.b16 %v90, %v88
    %v115 = vpack.c.b16 %v93, %v91
    %v116 = vpack.c.b16 %v94, %v92
    %v117 = vpack.c.b16 %v97, %v95
    %v118 = vpack.c.b16 %v98, %v96
    %v119 = vpack.c.b16 %v101, %v99
    %v120 = vpack.c.b16 %v102, %v100
    %v121 = vpack.c.b16 %v105, %v103
    %v122 = vpack.c.b16 %v106, %v104
    %139 = vmatprep.subr.bf16.mxu0 %v122
    %140 = vmatpush1.bf16.msra.mxu0 %v121
    %141 = vmatprep.subr.bf16.mxu0 %v120
    %142 = vmatpush1.bf16.msra.mxu0 %v119
    %143 = vmatprep.subr.bf16.mxu0 %v118
    %144 = vmatpush1.bf16.msra.mxu0 %v117
    %145 = vmatprep.subr.bf16.mxu0 %v116
    %146 = vmatpush1.bf16.msra.mxu0 %v115
    %147 = vmatprep.subr.bf16.mxu0 %v114
    %148 = vmatpush1.bf16.msra.mxu0 %v113
    %149 = vmatprep.subr.bf16.mxu0 %v112
    %150 = vmatpush1.bf16.msra.mxu0 %v111
    %151 = vmatprep.subr.bf16.mxu0 %v110
    %152 = vmatpush1.bf16.msra.mxu0 %v109
    %153 = vmatprep.subr.bf16.mxu0 %v108
    %154 = vmatpush1.bf16.msra.mxu0 %v107
    %155 = vmatprep.subr.bf16.mxu0 0
    %156 = vmatpush2.bf16.msra.mxu0 0
    %157 = vmatprep.subr.bf16.mxu0 0
    %158 = vmatpush2.bf16.msra.mxu0 0
    %159 = vmatprep.subr.bf16.mxu0 0
    %160 = vmatpush2.bf16.msra.mxu0 0
    %161 = vmatprep.subr.bf16.mxu0 0
    %162 = vmatpush2.bf16.msra.mxu0 0
    %163 = vmatprep.subr.bf16.mxu0 0
    %164 = vmatpush2.bf16.msra.mxu0 0
    %165 = vmatprep.subr.bf16.mxu0 0
    %166 = vmatpush2.bf16.msra.mxu0 0
    %167 = vmatprep.subr.bf16.mxu0 0
    %168 = vmatpush2.bf16.msra.mxu0 0
    %169 = vmatprep.subr.bf16.mxu0 0
    %170 = vmatpush2.bf16.msra.mxu0 0
    %171 = vmatprep.mubr.bf16.mxu0 0
    %172 = vmatmul.mubr.bf16.gmra.mxu0 %v30
    %v173 = vpop.f32.mrf.mxu0
    %v174 = vadd.f32 %v52, %v173
    %v175 = vpop.f32.mrf.mxu0
    %v176 = vadd.f32 %v56, %v175
    %v177 = vpop.f32.mrf.mxu0
    %v178 = vpop.f32.mrf.mxu0
    %179 = vdwg.mxu0
    %v180 = vmax.f32 %v174, 0.0
    %v181 = vmax.f32 %v176, 0.0
    %s182 = scalar_lea.vmem %s0, 4
    %v183 = vld [vmem:[%s182] sm:$0xf]
    %s184 = scalar_lea.vmem [#allocation2], 128
    %v185 = vld [vmem:[%s184] sm:$0xff]
    %v186 = vld [vmem:[%s184 + $0x8] sm:$0xff]
    %v187 = vld [vmem:[%s184 + $0x10] sm:$0xff]
    %v188 = vld [vmem:[%s184 + $0x18] sm:$0xff]
    %v189 = vld [vmem:[%s184 + $0x20] sm:$0xff]
    %v190 = vld [vmem:[%s184 + $0x28] sm:$0xff]
    %v191 = vld [vmem:[%s184 + $0x30] sm:$0xff]
    %v192 = vld [vmem:[%s184 + $0x38] sm:$0xff]
    %v193 = vld [vmem:[%s184 + $0x40] sm:$0xff]
    %v194 = vld [vmem:[%s184 + $0x48] sm:$0xff]
    %v195 = vld [vmem:[%s184 + $0x50] sm:$0xff]
    %v196 = vld [vmem:[%s184 + $0x58] sm:$0xff]
    %v197 = vld [vmem:[%s184 + $0x60] sm:$0xff]
    %v198 = vld [vmem:[%s184 + $0x68] sm:$0xff]
    %v199 = vld [vmem:[%s184 + $0x70] sm:$0xff]
    %v200 = vld [vmem:[%s184 + $0x78] sm:$0xff]
    %s201 = scalar_lea.vmem %s2, 2
    %v202 = vld [vmem:[%s201] sm:$0x3]
    %v204 = vlaneseq
    %v205 = vshrl.u32 %v204, 7
    %v206 = vsub.s32 0, %v205
    %v207 = vrot.slane %v202, %v206
    %v208 = vlaneseq
    %v209 = vshrl.u32 %v208, 7
    %v210 = vsub.s32 1, %v209
    %v211 = vrot.slane %v202, %v210
    %v230 = vunpack.c.l.b16 %v185
    %v231 = vunpack.c.h.b16 %v185
    %v232 = vunpack.c.l.b16 %v186
    %v233 = vunpack.c.h.b16 %v186
    %v234 = vunpack.c.l.b16 %v187
    %v235 = vunpack.c.h.b16 %v187
    %v236 = vunpack.c.l.b16 %v188
    %v237 = vunpack.c.h.b16 %v188
    %v238 = vunpack.c.l.b16 %v189
    %v239 = vunpack.c.h.b16 %v189
    %v240 = vunpack.c.l.b16 %v190
    %v241 = vunpack.c.h.b16 %v190
    %v242 = vunpack.c.l.b16 %v191
    %v243 = vunpack.c.h.b16 %v191
    %v244 = vunpack.c.l.b16 %v192
    %v245 = vunpack.c.h.b16 %v192
    %v246 = vunpack.c.l.b16 %v193
    %v247 = vunpack.c.h.b16 %v193
    %v248 = vunpack.c.l.b16 %v194
    %v249 = vunpack.c.h.b16 %v194
    %v250 = vunpack.c.l.b16 %v195
    %v251 = vunpack.c.h.b16 %v195
    %v252 = vunpack.c.l.b16 %v196
    %v253 = vunpack.c.h.b16 %v196
    %v254 = vunpack.c.l.b16 %v197
    %v255 = vunpack.c.h.b16 %v197
    %v256 = vunpack.c.l.b16 %v198
    %v257 = vunpack.c.h.b16 %v198
    %v258 = vunpack.c.l.b16 %v199
    %v259 = vunpack.c.h.b16 %v199
    %v260 = vunpack.c.l.b16 %v200
    %v261 = vunpack.c.h.b16 %v200
    %v262 = vpack.c.b16 %v232, %v230
    %v263 = vpack.c.b16 %v233, %v231
    %v264 = vpack.c.b16 %v236, %v234
    %v265 = vpack.c.b16 %v237, %v235
    %v266 = vpack.c.b16 %v240, %v238
    %v267 = vpack.c.b16 %v241, %v239
    %v268 = vpack.c.b16 %v244, %v242
    %v269 = vpack.c.b16 %v245, %v243
    %v270 = vpack.c.b16 %v248, %v246
    %v271 = vpack.c.b16 %v249, %v247
    %v272 = vpack.c.b16 %v252, %v250
    %v273 = vpack.c.b16 %v253, %v251
    %v274 = vpack.c.b16 %v256, %v254
    %v275 = vpack.c.b16 %v257, %v255
    %v276 = vpack.c.b16 %v260, %v258
    %v277 = vpack.c.b16 %v261, %v259
    %294 = vmatprep.subr.bf16.mxu0 %v277
    %295 = vmatpush1.bf16.msra.mxu0 %v276
    %296 = vmatprep.subr.bf16.mxu0 %v275
    %297 = vmatpush1.bf16.msra.mxu0 %v274
    %298 = vmatprep.subr.bf16.mxu0 %v273
    %299 = vmatpush1.bf16.msra.mxu0 %v272
    %300 = vmatprep.subr.bf16.mxu0 %v271
    %301 = vmatpush1.bf16.msra.mxu0 %v270
    %302 = vmatprep.subr.bf16.mxu0 %v269
    %303 = vmatpush1.bf16.msra.mxu0 %v268
    %304 = vmatprep.subr.bf16.mxu0 %v267
    %305 = vmatpush1.bf16.msra.mxu0 %v266
    %306 = vmatprep.subr.bf16.mxu0 %v265
    %307 = vmatpush1.bf16.msra.mxu0 %v264
    %308 = vmatprep.subr.bf16.mxu0 %v263
    %309 = vmatpush1.bf16.msra.mxu0 %v262
    %310 = vmatprep.subr.bf16.mxu0 0
    %311 = vmatpush2.bf16.msra.mxu0 0
    %312 = vmatprep.subr.bf16.mxu0 0
    %313 = vmatpush2.bf16.msra.mxu0 0
    %314 = vmatprep.subr.bf16.mxu0 0
    %315 = vmatpush2.bf16.msra.mxu0 0
    %316 = vmatprep.subr.bf16.mxu0 0
    %317 = vmatpush2.bf16.msra.mxu0 0
    %318 = vmatprep.subr.bf16.mxu0 0
    %319 = vmatpush2.bf16.msra.mxu0 0
    %320 = vmatprep.subr.bf16.mxu0 0
    %321 = vmatpush2.bf16.msra.mxu0 0
    %322 = vmatprep.subr.bf16.mxu0 0
    %323 = vmatpush2.bf16.msra.mxu0 0
    %324 = vmatprep.subr.bf16.mxu0 0
    %325 = vmatpush2.bf16.msra.mxu0 0
    %326 = vmatprep.mubr.bf16.mxu0 0
    %327 = vmatmul.mubr.bf16.gmra.mxu0 %v183
    %v328 = vpop.f32.mrf.mxu0
    %v329 = vadd.f32 %v207, %v328
    %v330 = vpop.f32.mrf.mxu0
    %v331 = vadd.f32 %v211, %v330
    %v332 = vpop.f32.mrf.mxu0
    %v333 = vpop.f32.mrf.mxu0
    %334 = vdwg.mxu0
    %v335 = vmax.f32 %v329, 0.0
    %v336 = vmax.f32 %v331, 0.0
    %v337 = vmul.f32 %v180, %v335
    %v338 = vmul.f32 %v181, %v336
    %s339 = scalar_lea.vmem %s0, 8
    %v340 = vld [vmem:[%s339] sm:$0xf]
    %s341 = scalar_lea.vmem [#allocation2], 256
    %v342 = vld [vmem:[%s341] sm:$0xff]
    %v343 = vld [vmem:[%s341 + $0x8] sm:$0xff]
    %v344 = vld [vmem:[%s341 + $0x10] sm:$0xff]
    %v345 = vld [vmem:[%s341 + $0x18] sm:$0xff]
    %v346 = vld [vmem:[%s341 + $0x20] sm:$0xff]
    %v347 = vld [vmem:[%s341 + $0x28] sm:$0xff]
    %v348 = vld [vmem:[%s341 + $0x30] sm:$0xff]
    %v349 = vld [vmem:[%s341 + $0x38] sm:$0xff]
    %v350 = vld [vmem:[%s341 + $0x40] sm:$0xff]
    %v351 = vld [vmem:[%s341 + $0x48] sm:$0xff]
    %v352 = vld [vmem:[%s341 + $0x50] sm:$0xff]
    %v353 = vld [vmem:[%s341 + $0x58] sm:$0xff]
    %v354 = vld [vmem:[%s341 + $0x60] sm:$0xff]
    %v355 = vld [vmem:[%s341 + $0x68] sm:$0xff]
    %v356 = vld [vmem:[%s341 + $0x70] sm:$0xff]
    %v357 = vld [vmem:[%s341 + $0x78] sm:$0xff]
    %s358 = scalar_lea.vmem %s2, 4
    %v359 = vld [vmem:[%s358] sm:$0x3]
    %v361 = vlaneseq
    %v362 = vshrl.u32 %v361, 7
    %v363 = vsub.s32 0, %v362
    %v364 = vrot.slane %v359, %v363
    %v365 = vlaneseq
    %v366 = vshrl.u32 %v365, 7
    %v367 = vsub.s32 1, %v366
    %v368 = vrot.slane %v359, %v367
    %v387 = vunpack.c.l.b16 %v342
    %v388 = vunpack.c.h.b16 %v342
    %v389 = vunpack.c.l.b16 %v343
    %v390 = vunpack.c.h.b16 %v343
    %v391 = vunpack.c.l.b16 %v344
    %v392 = vunpack.c.h.b16 %v344
    %v393 = vunpack.c.l.b16 %v345
    %v394 = vunpack.c.h.b16 %v345
    %v395 = vunpack.c.l.b16 %v346
    %v396 = vunpack.c.h.b16 %v346
    %v397 = vunpack.c.l.b16 %v347
    %v398 = vunpack.c.h.b16 %v347
    %v399 = vunpack.c.l.b16 %v348
    %v400 = vunpack.c.h.b16 %v348
    %v401 = vunpack.c.l.b16 %v349
    %v402 = vunpack.c.h.b16 %v349
    %v403 = vunpack.c.l.b16 %v350
    %v404 = vunpack.c.h.b16 %v350
    %v405 = vunpack.c.l.b16 %v351
    %v406 = vunpack.c.h.b16 %v351
    %v407 = vunpack.c.l.b16 %v352
    %v408 = vunpack.c.h.b16 %v352
    %v409 = vunpack.c.l.b16 %v353
    %v410 = vunpack.c.h.b16 %v353
    %v411 = vunpack.c.l.b16 %v354
    %v412 = vunpack.c.h.b16 %v354
    %v413 = vunpack.c.l.b16 %v355
    %v414 = vunpack.c.h.b16 %v355
    %v415 = vunpack.c.l.b16 %v356
    %v416 = vunpack.c.h.b16 %v356
    %v417 = vunpack.c.l.b16 %v357
    %v418 = vunpack.c.h.b16 %v357
    %v419 = vpack.c.b16 %v389, %v387
    %v420 = vpack.c.b16 %v390, %v388
    %v421 = vpack.c.b16 %v393, %v391
    %v422 = vpack.c.b16 %v394, %v392
    %v423 = vpack.c.b16 %v397, %v395
    %v424 = vpack.c.b16 %v398, %v396
    %v425 = vpack.c.b16 %v401, %v399
    %v426 = vpack.c.b16 %v402, %v400
    %v427 = vpack.c.b16 %v405, %v403
    %v428 = vpack.c.b16 %v406, %v404
    %v429 = vpack.c.b16 %v409, %v407
    %v430 = vpack.c.b16 %v410, %v408
    %v431 = vpack.c.b16 %v413, %v411
    %v432 = vpack.c.b16 %v414, %v412
    %v433 = vpack.c.b16 %v417, %v415
    %v434 = vpack.c.b16 %v418, %v416
    %451 = vmatprep.subr.bf16.mxu0 %v434
    %452 = vmatpush1.bf16.msra.mxu0 %v433
    %453 = vmatprep.subr.bf16.mxu0 %v432
    %454 = vmatpush1.bf16.msra.mxu0 %v431
    %455 = vmatprep.subr.bf16.mxu0 %v430
    %456 = vmatpush1.bf16.msra.mxu0 %v429
    %457 = vmatprep.subr.bf16.mxu0 %v428
    %458 = vmatpush1.bf16.msra.mxu0 %v427
    %459 = vmatprep.subr.bf16.mxu0 %v426
    %460 = vmatpush1.bf16.msra.mxu0 %v425
    %461 = vmatprep.subr.bf16.mxu0 %v424
    %462 = vmatpush1.bf16.msra.mxu0 %v423
    %463 = vmatprep.subr.bf16.mxu0 %v422
    %464 = vmatpush1.bf16.msra.mxu0 %v421
    %465 = vmatprep.subr.bf16.mxu0 %v420
    %466 = vmatpush1.bf16.msra.mxu0 %v419
    %467 = vmatprep.subr.bf16.mxu0 0
    %468 = vmatpush2.bf16.msra.mxu0 0
    %469 = vmatprep.subr.bf16.mxu0 0
    %470 = vmatpush2.bf16.msra.mxu0 0
    %471 = vmatprep.subr.bf16.mxu0 0
    %472 = vmatpush2.bf16.msra.mxu0 0
    %473 = vmatprep.subr.bf16.mxu0 0
    %474 = vmatpush2.bf16.msra.mxu0 0
    %475 = vmatprep.subr.bf16.mxu0 0
    %476 = vmatpush2.bf16.msra.mxu0 0
    %477 = vmatprep.subr.bf16.mxu0 0
    %478 = vmatpush2.bf16.msra.mxu0 0
    %479 = vmatprep.subr.bf16.mxu0 0
    %480 = vmatpush2.bf16.msra.mxu0 0
    %481 = vmatprep.subr.bf16.mxu0 0
    %482 = vmatpush2.bf16.msra.mxu0 0
    %483 = vmatprep.mubr.bf16.mxu0 0
    %484 = vmatmul.mubr.bf16.gmra.mxu0 %v340
    %v485 = vpop.f32.mrf.mxu0
    %v486 = vadd.f32 %v364, %v485
    %v487 = vpop.f32.mrf.mxu0
    %v488 = vadd.f32 %v368, %v487
    %v489 = vpop.f32.mrf.mxu0
    %v490 = vpop.f32.mrf.mxu0
    %491 = vdwg.mxu0
    %v492 = vmax.f32 %v486, 0.0
    %v493 = vmax.f32 %v488, 0.0
    %v494 = vmul.f32 %v337, %v492
    %v495 = vmul.f32 %v338, %v493
    %v496 = vadd.f32 %v494, 0.0
    %v497 = vadd.f32 %v496, %v495
    %v498 = vmax.f32 %v497, 0.0
    %499 = vst [vmem:[#allocation5] sm:$0xff] %v498
    // Predicated region
    $region18: #{_mutan_forward.1} parent=1 // pred_check
      _
    $region19: #{_mutan_forward.1} parent=1 // pred_check_branch
      %501 = sbr.rel (0) target = $region21
    $region20: #{_mutan_forward.1} parent=1 // pred_region
      %s503 = ssub.s32 128, 128
      %504 = vsyncadd [#allocation4], %s503
      %s506 = sshll.u32 [#allocation5], 4
      %s507 = int_to_ptr.vmem [resolvable:$true] %s506
      %509 = dma.vmem_to_hbm [thread:$0]  %s507, 128, %s3, [#allocation4]
    $region21: #{_mutan_forward.1} parent=1 // pred_fallthru
      _
    // Predicated region
    $region22: #{_mutan_forward.1} parent=1 // pred_check
      _
    $region23: #{_mutan_forward.1} parent=1 // pred_check_branch
      %511 = sbr.rel (0) target = $region25
    $region24: #{_mutan_forward.1} parent=1 // pred_region
      %512 = dma.done [#allocation4], 128
    $region25: #{_mutan_forward.1} parent=1 // pred_fallthru
      _
    %513 = vsyncpa [#allocation3], 1
    %514 = vsyncpa [#allocation4], 1

</llo_original>
